<compile_context>
chip_gen: v5e
topology: v5e:2x2
jax: 0.10.0
libtpu: 0.0.40
codegen_flags: <defaults>
</compile_context>

<pallas_src>
import functools
import math

import jax
import jax.numpy as jnp
from jax.experimental import pallas as pl
from jax.experimental.pallas import tpu as pltpu


def _round_up(x, n):
    return ((x + n - 1) // n) * n


def default_block_c(class_num):
    # Production default: >= 8192 on v5e/v6e, >= 16384 on v7x.  Clamp for tiny class counts.
    return max(256, min(_round_up(class_num, 256), 8192))


def arcface_kernel(xn_ref, w_ref, lab_ref, l_ref, t_ref, *,
                   s, cos_m, sin_m, th, mm, c_total, block_c, tiles_per_core, padded):
    p = pl.program_id(0)          # core split            ("parallel")
    c = pl.program_id(1)          # class-tile stream      ("arbitrary" reduction)

    # Per-core accumulators live in the resident output blocks (index depends only on p).
    @pl.when(c == 0)
    def _init():
        l_ref[...] = jnp.zeros_like(l_ref)
        t_ref[...] = jnp.zeros_like(t_ref)

    # Cosine tile on the MXU: (B, E) @ (block_c, E)^T with f32 accumulation.
    # Inputs are already L2-normalized and in the streaming/matmul dtype.
    cosine = jax.lax.dot_general(
        xn_ref[...], w_ref[...], (((1,), (1,)), ((), ())),
        preferred_element_type=jnp.float32)
    cosine = jnp.clip(cosine, -1.0, 1.0)                            # (B, block_c)

    B = cosine.shape[0]
    c_start = (p * tiles_per_core + c) * block_c                    # scalar class offset
    lab_local = lab_ref[...] - c_start                              # (B, 1)
    col_local = jax.lax.broadcasted_iota(jnp.int32, (B, block_c), 1)
    one_hot_f = (col_local == lab_local).astype(jnp.float32)        # (B, block_c)

    # Additive angular margin applied only to the (B, 1) target entries.
    cos_t = jnp.sum(one_hot_f * cosine, axis=1, keepdims=True)      # (B, 1)
    has_t = jnp.sum(one_hot_f, axis=1, keepdims=True)               # (B, 1) in {0, 1}
    sine_t = jnp.sqrt(jnp.maximum(1.0 - cos_t * cos_t, 0.0))
    phi_t = cos_t * cos_m - sine_t * sin_m
    phi_t = jnp.where(cos_t > th, phi_t, cos_t - mm)                # easy_margin=False

    # Fixed-shift sum-exp (logits <= s because cosine <= 1 and phi <= 1): no running max.
    shifted = s * (cosine + one_hot_f * (phi_t - cos_t) - 1.0)      # = logits - s
    if padded:
        valid = jax.lax.broadcasted_iota(jnp.int32, (1, block_c), 1) < (c_total - c_start)
        shifted = jnp.where(valid, shifted, -jnp.inf)               # exp -> 0 on pad columns

    l_ref[0] += jnp.sum(jnp.exp(shifted), axis=1, keepdims=True)    # (B, 1)
    t_ref[0] += has_t * (s * phi_t)                                 # (B, 1)


def prepare_arcface_weight(weight, *, block_c, num_cores=1,
                           matmul_dtype=jnp.bfloat16, eps=1e-12):
    """Normalize (f32), cast to the streaming dtype and pad ONCE, outside the hot path.

    Call this when the weight is created/updated, not per forward pass -- otherwise the
    cast+pad HBM traffic (6-10 B/elem) dwarfs the kernel's own 2 B/elem stream.
    """
    C, E = weight.shape
    w32 = weight.astype(jnp.float32)
    inv = jax.lax.rsqrt(jnp.maximum(jnp.sum(w32 * w32, axis=1, keepdims=True), eps * eps))
    wn = (w32 * inv).astype(matmul_dtype)                           # normalize in f32, then cast
    num_tiles = _round_up(max((C + block_c - 1) // block_c, 1), num_cores)
    pad = num_tiles * block_c - C
    if pad:
        wn = jnp.pad(wn, ((0, pad), (0, 0)))
    return wn


def arcface_loss(x, labels, w_prepped, *, class_num, s=30.0, m=0.5,
                 block_c, num_cores=1, eps=1e-12):
    """x: (B, E) f32, labels: (B,) int, w_prepped: output of prepare_arcface_weight."""
    B, E = x.shape
    C_pad, E_w = w_prepped.shape
    assert E == E_w and C_pad % block_c == 0 and block_c % 8 == 0
    num_tiles = C_pad // block_c
    assert num_tiles % num_cores == 0
    tiles_per_core = num_tiles // num_cores

    cos_m = math.cos(m)
    sin_m = math.sin(m)
    th = math.cos(math.pi - m)
    mm_ = math.sin(math.pi - m) * m

    # x normalization hoisted out of the kernel (tiny (B, E) op), cast to the MXU dtype.
    x32 = x.astype(jnp.float32)
    xn = (x32 * jax.lax.rsqrt(
        jnp.maximum(jnp.sum(x32 * x32, axis=1, keepdims=True), eps * eps))
          ).astype(w_prepped.dtype)
    lab2d = labels.astype(jnp.int32).reshape(B, 1)

    kernel = functools.partial(
        arcface_kernel, s=float(s), cos_m=cos_m, sin_m=sin_m, th=th, mm=mm_,
        c_total=class_num, block_c=block_c, tiles_per_core=tiles_per_core,
        padded=bool(C_pad != class_num))

    w_bytes = jnp.dtype(w_prepped.dtype).itemsize
    cost = pl.CostEstimate(
        flops=2 * B * C_pad * E,
        transcendentals=B * C_pad,
        bytes_accessed=C_pad * E * w_bytes + B * E * w_bytes + B * 4
                       + 2 * num_cores * B * 4)

    l_part, t_part = pl.pallas_call(
        kernel,
        out_shape=(jax.ShapeDtypeStruct((num_cores, B, 1), jnp.float32),
                   jax.ShapeDtypeStruct((num_cores, B, 1), jnp.float32)),
        grid=(num_cores, tiles_per_core),
        in_specs=[
            pl.BlockSpec((B, E), lambda p, c: (0, 0)),              # xn: resident
            # weight tiles stream from HBM (double-buffered); prefer bigger block_c over
            # deeper buffering.
            pl.BlockSpec((block_c, E), lambda p, c: (p * tiles_per_core + c, 0)),
            pl.BlockSpec((B, 1), lambda p, c: (0, 0)),              # labels (vector compare)
        ],
        out_specs=(
            pl.BlockSpec((1, B, 1), lambda p, c: (p, 0, 0)),        # per-core sum-exp
            pl.BlockSpec((1, B, 1), lambda p, c: (p, 0, 0)),        # per-core s*phi_target
        ),
        compiler_params=pltpu.CompilerParams(
            dimension_semantics=("parallel", "arbitrary")),
        cost_estimate=cost,
    )(xn, w_prepped, lab2d)

    # Tiny JAX epilogue: combine per-core partials into the batch-mean cross-entropy.
    l = jnp.sum(l_part[:, :, 0], axis=0)                            # (B,)
    t = jnp.sum(t_part[:, :, 0], axis=0)                            # (B,)
    lse = s + jnp.log(l)                                            # fixed-shift logsumexp
    return jnp.mean(lse - t)


def arcface_reference(x, weight, labels, *, s, m):
    """Pure-JAX f32 reference matching the PyTorch forward."""
    cos_m = math.cos(m)
    sin_m = math.sin(m)
    th = math.cos(math.pi - m)
    mm_ = math.sin(math.pi - m) * m
    xn = x / jnp.maximum(jnp.sqrt(jnp.sum(x * x, axis=1, keepdims=True)), 1e-12)
    wn = weight / jnp.maximum(jnp.sqrt(jnp.sum(weight * weight, axis=1, keepdims=True)), 1e-12)
    cosine = jnp.clip(xn @ wn.T, -1.0, 1.0)
    C = weight.shape[0]
    one_hot = labels[:, None] == jnp.arange(C)[None, :]
    cos_t = jnp.sum(jnp.where(one_hot, cosine, 0.0), axis=1)
    sine_t = jnp.sqrt(1.0 - cos_t * cos_t)
    phi = jnp.where(cos_t > th, cos_t * cos_m - sine_t * sin_m, cos_t - mm_)
    logits = s * jnp.where(one_hot, phi[:, None], cosine)
    lse = jax.scipy.special.logsumexp(logits, axis=1)
    return jnp.mean(lse - s * phi)


if __name__ == "__main__":
    # module params: emdsize=E, class_num=C, s, m
    B, E, C = 8, 128, 384
    s_scale, margin = 30.0, 0.5
    block_c = 256       # small test tile; use default_block_c(C) (>=8192, >=16384 on v7x) in prod

    key = jax.random.PRNGKey(0)
    kx, kw, kl = jax.random.split(key, 3)

    x = jax.random.normal(kx, (B, E), dtype=jnp.float32)
    # xavier_uniform_ on weight of shape (class_num, emdsize)
    bound = math.sqrt(6.0 / (E + C))
    weight = jax.random.uniform(kw, (C, E), dtype=jnp.float32, minval=-bound, maxval=bound)
    labels = jax.random.randint(kl, (B,), 0, C, dtype=jnp.int32)

    ref = float(arcface_reference(x, weight, labels, s=s_scale, m=margin))

    # 1) bf16-streamed weight, single-core grid.
    w_bf16 = prepare_arcface_weight(weight, block_c=block_c, num_cores=1,
                                    matmul_dtype=jnp.bfloat16)
    loss_bf16 = arcface_loss(x, labels, w_bf16, class_num=C, s=s_scale, m=margin,
                             block_c=block_c, num_cores=1)
    jax.block_until_ready(loss_bf16)
    assert loss_bf16.shape == () and bool(jnp.isfinite(loss_bf16))
    assert abs(float(loss_bf16) - ref) <= max(0.2, 0.02 * abs(ref)), (float(loss_bf16), ref)

    # 2) Class stream split across 2 cores (both TCs on v7x; still correct on 1-TC chips).
    w_bf16_2 = prepare_arcface_weight(weight, block_c=block_c, num_cores=2,
                                      matmul_dtype=jnp.bfloat16)
    loss_2c = arcface_loss(x, labels, w_bf16_2, class_num=C, s=s_scale, m=margin,
                           block_c=block_c, num_cores=2)
    jax.block_until_ready(loss_2c)
    assert abs(float(loss_2c) - float(loss_bf16)) <= max(1e-3, 1e-4 * abs(ref)), (
        float(loss_2c), float(loss_bf16))

    # 3) f32-streamed weight path (no cast of the weight; exercises the exact-f32 stream).
    w_f32 = prepare_arcface_weight(weight, block_c=block_c, num_cores=1,
                                   matmul_dtype=jnp.float32)
    loss_f32 = arcface_loss(x, labels, w_f32, class_num=C, s=s_scale, m=margin,
                            block_c=block_c, num_cores=1)
    jax.block_until_ready(loss_f32)
    assert abs(float(loss_f32) - ref) <= max(0.2, 0.02 * abs(ref)), (float(loss_f32), ref)

    print("KERNEL_OK")
</pallas_src>

<mosaic_0001>
module attributes {stable_mosaic.version = 11 : i64} {
  func.func @arcface_kernel(%arg0: i32, %arg1: i32, %arg2: memref<8x128xbf16, #tpu.memory_space<vmem>>, %arg3: memref<256x128xbf16, #tpu.memory_space<vmem>>, %arg4: memref<8x1xi32, #tpu.memory_space<vmem>>, %arg5: memref<1x8x1xf32, #tpu.memory_space<vmem>>, %arg6: memref<1x8x1xf32, #tpu.memory_space<vmem>>) attributes {dimension_semantics = [#tpu.dimension_semantics<parallel>, #tpu.dimension_semantics<arbitrary>], iteration_bounds = array<i64: 1, 2>, scalar_prefetch = 0 : i64, scratch_operands = 0 : i64, tpu.core_type = #tpu.core_type<tc>, window_params = [{pipeline_mode = #tpu.pipeline_mode<synchronous>, transform_indices = @transform_0, window_bounds = array<i64: 8, 128>}, {transform_indices = @transform_1, window_bounds = array<i64: 256, 128>}, {pipeline_mode = #tpu.pipeline_mode<synchronous>, transform_indices = @transform_2, window_bounds = array<i64: 8, 1>}, {transform_indices = @transform_3, window_bounds = array<i64: 1, 8, 1>}, {transform_indices = @transform_4, window_bounds = array<i64: 1, 8, 1>}]} {
    %c0_i32 = arith.constant 0 : i32
    %0 = arith.cmpi eq, %arg1, %c0_i32 : i32
    %1 = arith.extui %0 : i1 to i32
    %c0_i32_0 = arith.constant 0 : i32
    %2 = arith.cmpi ne, %1, %c0_i32_0 : i32
    scf.if %2 {
      %cst_33 = arith.constant 0.000000e+00 : f32
      %76 = vector.broadcast %cst_33 : f32 to vector<1x8x1xf32>
      %c0_34 = arith.constant 0 : index
      %c0_35 = arith.constant 0 : index
      %c0_36 = arith.constant 0 : index
      %77 = vector.load %arg5[%c0_34, %c0_35, %c0_36] : memref<1x8x1xf32, #tpu.memory_space<vmem>>, vector<1x8x1xf32>
      tpu.vector_store %arg5[%c0_34, %c0_35, %c0_36], %76 {strides = array<i32>} : memref<1x8x1xf32, #tpu.memory_space<vmem>>, vector<1x8x1xf32>,
      %cst_37 = arith.constant 0.000000e+00 : f32
      %78 = vector.broadcast %cst_37 : f32 to vector<1x8x1xf32>
      %c0_38 = arith.constant 0 : index
      %c0_39 = arith.constant 0 : index
      %c0_40 = arith.constant 0 : index
      %79 = vector.load %arg6[%c0_38, %c0_39, %c0_40] : memref<1x8x1xf32, #tpu.memory_space<vmem>>, vector<1x8x1xf32>
      tpu.vector_store %arg6[%c0_38, %c0_39, %c0_40], %78 {strides = array<i32>} : memref<1x8x1xf32, #tpu.memory_space<vmem>>, vector<1x8x1xf32>,
    } else {
    }
    %c0 = arith.constant 0 : index
    %c0_1 = arith.constant 0 : index
    %3 = vector.load %arg2[%c0, %c0_1] : memref<8x128xbf16, #tpu.memory_space<vmem>>, vector<8x128xbf16>
    %c0_2 = arith.constant 0 : index
    %c0_3 = arith.constant 0 : index
    %4 = vector.load %arg3[%c0_2, %c0_3] : memref<256x128xbf16, #tpu.memory_space<vmem>>, vector<256x128xbf16>
    %cst = arith.constant dense<0.000000e+00> : vector<8x256xf32>
    %5 = tpu.matmul %3, %4, %cst {dimension_numbers = #tpu.dot_dimension_numbers<[1], [1], [0], [0], [0, 0, 1, 0], [], []>} : vector<8x128xbf16>, vector<256x128xbf16>, vector<8x256xf32> -> vector<8x256xf32>
    %cst_4 = arith.constant -1.000000e+00 : f32
    %cst_5 = arith.constant 1.000000e+00 : f32
    %6 = vector.broadcast %cst_4 : f32 to vector<8x256xf32>
    %7 = arith.maximumf %6, %5 : vector<8x256xf32>
    %8 = vector.broadcast %cst_5 : f32 to vector<8x256xf32>
    %9 = arith.minimumf %8, %7 : vector<8x256xf32>
    %c2_i32 = arith.constant 2 : i32
    %10 = arith.muli %arg0, %c2_i32 : i32
    %11 = arith.addi %10, %arg1 : i32
    %c256_i32 = arith.constant 256 : i32
    %12 = arith.muli %11, %c256_i32 : i32
    %c0_6 = arith.constant 0 : index
    %c0_7 = arith.constant 0 : index
    %13 = vector.load %arg4[%c0_6, %c0_7] : memref<8x1xi32, #tpu.memory_space<vmem>>, vector<8x1xi32>
    %14 = vector.broadcast %12 : i32 to vector<8x1xi32>
    %15 = arith.subi %13, %14 : vector<8x1xi32>
    %16 = tpu.iota {dimensions = array<i32: 1>} : vector<8x256xi32>
    %17 = vector.broadcast %15 : vector<8x1xi32> to vector<8x256xi32>
    %18 = arith.cmpi eq, %16, %17 : vector<8x256xi32>
    %19 = arith.extui %18 : vector<8x256xi1> to vector<8x256xi32>
    %20 = arith.sitofp %19 : vector<8x256xi32> to vector<8x256xf32>
    %21 = arith.mulf %20, %9 : vector<8x256xf32>
    %cst_8 = arith.constant dense<0.000000e+00> : vector<8xf32>
    %22 = vector.multi_reduction <add>, %21, %cst_8 [1] : vector<8x256xf32> to vector<8xf32>
    %23 = vector.shape_cast %22 : vector<8xf32> to vector<8x1xf32>
    %cst_9 = arith.constant dense<0.000000e+00> : vector<8xf32>
    %24 = vector.multi_reduction <add>, %20, %cst_9 [1] : vector<8x256xf32> to vector<8xf32>
    %25 = vector.shape_cast %24 : vector<8xf32> to vector<8x1xf32>
    %26 = arith.mulf %23, %23 : vector<8x1xf32>
    %cst_10 = arith.constant 1.000000e+00 : f32
    %27 = vector.broadcast %cst_10 : f32 to vector<8x1xf32>
    %28 = arith.subf %27, %26 : vector<8x1xf32>
    %cst_11 = arith.constant 0.000000e+00 : f32
    %29 = vector.broadcast %cst_11 : f32 to vector<8x1xf32>
    %30 = arith.maximumf %28, %29 : vector<8x1xf32>
    %31 = math.sqrt %30 : vector<8x1xf32>
    %cst_12 = arith.constant 0.87758255 : f32
    %32 = vector.broadcast %cst_12 : f32 to vector<8x1xf32>
    %33 = arith.mulf %23, %32 : vector<8x1xf32>
    %cst_13 = arith.constant 0.47942555 : f32
    %34 = vector.broadcast %cst_13 : f32 to vector<8x1xf32>
    %35 = arith.mulf %31, %34 : vector<8x1xf32>
    %36 = arith.subf %33, %35 : vector<8x1xf32>
    %cst_14 = arith.constant -0.87758255 : f32
    %37 = vector.broadcast %cst_14 : f32 to vector<8x1xf32>
    %38 = arith.cmpf ogt, %23, %37 : vector<8x1xf32>
    %cst_15 = arith.constant 0.239712775 : f32
    %39 = vector.broadcast %cst_15 : f32 to vector<8x1xf32>
    %40 = arith.subf %23, %39 : vector<8x1xf32>
    %41 = arith.select %38, %36, %40 : vector<8x1xi1>, vector<8x1xf32>
    %42 = arith.subf %41, %23 : vector<8x1xf32>
    %43 = vector.broadcast %42 : vector<8x1xf32> to vector<8x256xf32>
    %44 = arith.mulf %20, %43 : vector<8x256xf32>
    %45 = arith.addf %9, %44 : vector<8x256xf32>
    %cst_16 = arith.constant 1.000000e+00 : f32
    %46 = vector.broadcast %cst_16 : f32 to vector<8x256xf32>
    %47 = arith.subf %45, %46 : vector<8x256xf32>
    %cst_17 = arith.constant 3.000000e+01 : f32
    %48 = vector.broadcast %cst_17 : f32 to vector<8x256xf32>
    %49 = arith.mulf %48, %47 : vector<8x256xf32>
    %50 = tpu.iota {dimensions = array<i32: 1>} : vector<1x256xi32>
    %c384_i32 = arith.constant 384 : i32
    %51 = arith.subi %c384_i32, %12 : i32
    %52 = vector.broadcast %51 : i32 to vector<1x256xi32>
    %53 = arith.cmpi slt, %50, %52 : vector<1x256xi32>
    %cst_18 = arith.constant 0xFF800000 : f32
    %54 = vector.shape_cast %53 : vector<1x256xi1> to vector<1x256xi1>
    %55 = vector.broadcast %54 : vector<1x256xi1> to vector<8x256xi1>
    %56 = vector.broadcast %cst_18 : f32 to vector<8x256xf32>
    %57 = arith.select %55, %49, %56 : vector<8x256xi1>, vector<8x256xf32>
    %c0_19 = arith.constant 0 : index
    %c0_20 = arith.constant 0 : index
    %c0_21 = arith.constant 0 : index
    %58 = vector.load %arg5[%c0_19, %c0_20, %c0_21] : memref<1x8x1xf32, #tpu.memory_space<vmem>>, vector<1x8x1xf32>
    %59 = vector.shape_cast %58 : vector<1x8x1xf32> to vector<8x1xf32>
    %60 = math.exp %57 : vector<8x256xf32>
    %cst_22 = arith.constant dense<0.000000e+00> : vector<8xf32>
    %61 = vector.multi_reduction <add>, %60, %cst_22 [1] : vector<8x256xf32> to vector<8xf32>
    %62 = vector.shape_cast %61 : vector<8xf32> to vector<8x1xf32>
    %63 = arith.addf %59, %62 : vector<8x1xf32>
    %c0_23 = arith.constant 0 : index
    %c0_24 = arith.constant 0 : index
    %c0_25 = arith.constant 0 : index
    %64 = vector.load %arg5[%c0_23, %c0_24, %c0_25] : memref<1x8x1xf32, #tpu.memory_space<vmem>>, vector<1x8x1xf32>
    %65 = vector.shape_cast %64 : vector<1x8x1xf32> to vector<8x1xf32>
    %66 = vector.shape_cast %63 : vector<8x1xf32> to vector<1x8x1xf32>
    tpu.vector_store %arg5[%c0_23, %c0_24, %c0_25], %66 {strides = array<i32>} : memref<1x8x1xf32, #tpu.memory_space<vmem>>, vector<1x8x1xf32>,
    %c0_26 = arith.constant 0 : index
    %c0_27 = arith.constant 0 : index
    %c0_28 = arith.constant 0 : index
    %67 = vector.load %arg6[%c0_26, %c0_27, %c0_28] : memref<1x8x1xf32, #tpu.memory_space<vmem>>, vector<1x8x1xf32>
    %68 = vector.shape_cast %67 : vector<1x8x1xf32> to vector<8x1xf32>
    %cst_29 = arith.constant 3.000000e+01 : f32
    %69 = vector.broadcast %cst_29 : f32 to vector<8x1xf32>
    %70 = arith.mulf %69, %41 : vector<8x1xf32>
    %71 = arith.mulf %25, %70 : vector<8x1xf32>
    %72 = arith.addf %68, %71 : vector<8x1xf32>
    %c0_30 = arith.constant 0 : index
    %c0_31 = arith.constant 0 : index
    %c0_32 = arith.constant 0 : index
    %73 = vector.load %arg6[%c0_30, %c0_31, %c0_32] : memref<1x8x1xf32, #tpu.memory_space<vmem>>, vector<1x8x1xf32>
    %74 = vector.shape_cast %73 : vector<1x8x1xf32> to vector<8x1xf32>
    %75 = vector.shape_cast %72 : vector<8x1xf32> to vector<1x8x1xf32>
    tpu.vector_store %arg6[%c0_30, %c0_31, %c0_32], %75 {strides = array<i32>} : memref<1x8x1xf32, #tpu.memory_space<vmem>>, vector<1x8x1xf32>,
    return
  }
  func.func @transform_0(%arg0: i32, %arg1: i32) -> (i32, i32) {
    %c0_i32 = arith.constant 0 : i32
    %c0_i32_0 = arith.constant 0 : i32
    %c0_i32_1 = arith.constant 0 : i32
    return %c0_i32, %c0_i32_0 : i32, i32
  }
  func.func @transform_1(%arg0: i32, %arg1: i32) -> (i32, i32) {
    %c2_i32 = arith.constant 2 : i32
    %0 = arith.muli %arg0, %c2_i32 : i32
    %1 = arith.addi %0, %arg1 : i32
    %c0_i32 = arith.constant 0 : i32
    %c0_i32_0 = arith.constant 0 : i32
    return %1, %c0_i32 : i32, i32
  }
  func.func @transform_2(%arg0: i32, %arg1: i32) -> (i32, i32) {
    %c0_i32 = arith.constant 0 : i32
    %c0_i32_0 = arith.constant 0 : i32
    %c0_i32_1 = arith.constant 0 : i32
    return %c0_i32, %c0_i32_0 : i32, i32
  }
  func.func @transform_3(%arg0: i32, %arg1: i32) -> (i32, i32, i32) {
    %c0_i32 = arith.constant 0 : i32
    %c0_i32_0 = arith.constant 0 : i32
    %c0_i32_1 = arith.constant 0 : i32
    return %arg0, %c0_i32, %c0_i32_0 : i32, i32, i32
  }
  func.func @transform_4(%arg0: i32, %arg1: i32) -> (i32, i32, i32) {
    %c0_i32 = arith.constant 0 : i32
    %c0_i32_0 = arith.constant 0 : i32
    %c0_i32_1 = arith.constant 0 : i32
    return %arg0, %c0_i32, %c0_i32_0 : i32, i32, i32
  }
}

</mosaic_0001>

<llo_original>
// kernel: tpu_custom_call.1
$region0: #{tpu_custom_call.1}
  #allocation0 [shape = 'u32[]', space=smem, size = 0x4, offset = 0x4, fixed_abs, tag = 'smem constant byte address 0x4 - core index']
  #allocation1 [shape = 'u32[72,128]{1,0:T(1,128)}', space=vmem, size = 0x9000, scoped, tag = 'internal scratch']
  %s0 = inlined_call_operand.vmem [shape: bf16[8,128], index: 0, kind: input, shape index: {}]
  %s1 = inlined_call_operand.hbm [shape: bf16[512,128], index: 1, kind: input, shape index: {}]
  %s2 = inlined_call_operand.vmem [shape: s32[8,1], index: 2, kind: input, shape index: {}]
  %s3 = inlined_call_operand.vmem [shape: f32[1,8,1], index: 3, kind: output, shape index: {0}]
  %s4 = inlined_call_operand.vmem [shape: f32[1,8,1], index: 4, kind: output, shape index: {1}]
  %5 = xla_tuple %s3, %s4
  %s6 = sld [smem:[#allocation0]]
  $region61: #{tpu_custom_call.1} parent=0
    _
  %s8 = ssub.s32 1, %s6
  %s9 = scalar_select 0, %s8, %s6
  $region1: #{tpu_custom_call.1} parent=0
    #allocation2 [shape = 'u8[131072]{0}', space=vmem, size = 0x20000, scoped, tag = 'input window, operand 1']
    #allocation3 [shape = 's32[2]{0}', space=sflag, size = 0x8, scoped, tag = 'scoped memory for tpu_custom_call.1']
    %10 = vsyncpa [#allocation3], 0
    %s11 = scalar_lea.sflag [#allocation3], 1
    %12 = vsyncpa %s11, 0
    loop: start=0, step=1, limit=4
    $region2: #{tpu_custom_call.1} parent=1 // loop_pre_header
      _
    $region3: #{tpu_custom_call.1} parent=1 // loop_header
      %s14 = sphi 0, %s18
      %p15 = scmp.ge.s32.totalorder %s14, 4
      %s21 = sphi 0, %s33
      %s22 = sphi 0, %s29
      %s23 = sphi 0, %s21
      %s24 = sphi 0, %s22
      %s25 = sphi 0, %s23
      %s26 = sphi 0, %s24
      %s34 = sphi 0, %s34
      %s36 = sphi 0, %s34
      %s37 = sphi 0, %s36
      %s51 = sphi 0, %s37
      %s61 = sphi 0, %s63
      %s64 = sphi 0, %s61
      %s65 = sphi 0, %s64
      %s81 = sphi 0, %s65
      %s85 = sphi 0, %s85
      %s87 = sphi 0, %s85
      %s88 = sphi 0, %s87
      %s102 = sphi 0, %s88
      %s108 = sphi 0, %s110
      %s111 = sphi 0, %s108
      %s112 = sphi 0, %s111
      %s128 = sphi 0, %s112
      %s134 = sphi 0, %s136
      %s137 = sphi 0, %s134
      %s138 = sphi 0, %s137
      %s154 = sphi 0, %s138
    $region4: #{tpu_custom_call.1} parent=1 // loop_header_branch
      %17 = sbr.rel (%p15) target = $region8
    $region5: #{tpu_custom_call.1} parent=1 // loop_body
      %s19 = ssub.s32 %s14, 1
      %s20 = ssub.s32 %s14, 2
      %s27 = sadd.s32 1, %s22
      %p28 = scmp.ge.s32.totalorder %s27, 2
      %s29 = scalar_select %p28, 0, %s27
      %s30 = sadd.s32 1, %s21
      %s31 = scalar_select %p28, %s30, %s21
      %p32 = scmp.ge.s32.totalorder %s31, 1
      %s33 = scalar_select %p32, 0, %s31
      %s35 = sadd.s32 %s34, 1
      %p38 = scmp.eq.s32.totalorder %s14, 1
      %p39 = scmp.ne.s32.totalorder %s34, %s36
      %p40 = scmp.eq.s32.totalorder %s14, 0
      %p41 = por %p39, %p40
      %p42 = scmp.ne.s32.totalorder %s34, %s36
      %p43 = scmp.eq.s32.totalorder %s19, 1
      %p44 = por %p42, %p43
      %p45 = scmp.ne.s32.totalorder %s36, %s37
      %p46 = scmp.eq.s32.totalorder %s19, 0
      %p47 = por %p45, %p46
      %p48 = scmp.ne.s32.totalorder %s36, %s37
      %p49 = scmp.eq.s32.totalorder %s20, 1
      %p50 = por %p48, %p49
      %p52 = scmp.ne.s32.totalorder %s37, %s51
      %p53 = scmp.eq.s32.totalorder %s20, 0
      %p54 = por %p52, %p53
      %s55 = smul.u32 %s21, 2
      %s56 = sadd.s32 %s55, %s22
      %s57 = smul.u32 %s33, 2
      %s58 = sadd.s32 %s57, %s29
      %s59 = ssub.s32 %s56, %s58
      %p60 = scmp.eq.s32.totalorder %s59, 0
      %s62 = sadd.s32 %s61, 1
      %s63 = scalar_select %p60, %s61, %s62
      %p66 = pneg %p60
      %p67 = scmp.eq.s32.totalorder %s14, 1
      %p68 = por %p66, %p67
      %p69 = scmp.ne.s32.totalorder %s61, %s64
      %p70 = scmp.eq.s32.totalorder %s14, 0
      %p71 = por %p69, %p70
      %p72 = scmp.ne.s32.totalorder %s61, %s64
      %p73 = scmp.eq.s32.totalorder %s19, 1
      %p74 = por %p72, %p73
      %p75 = scmp.ne.s32.totalorder %s64, %s65
      %p76 = scmp.eq.s32.totalorder %s19, 0
      %p77 = por %p75, %p76
      %p78 = scmp.ne.s32.totalorder %s64, %s65
      %p79 = scmp.eq.s32.totalorder %s20, 1
      %p80 = por %p78, %p79
      %p82 = scmp.ne.s32.totalorder %s65, %s81
      %p83 = scmp.eq.s32.totalorder %s20, 0
      %p84 = por %p82, %p83
      %s86 = sadd.s32 %s85, 1
      %p89 = scmp.eq.s32.totalorder %s14, 1
      %p90 = scmp.ne.s32.totalorder %s85, %s87
      %p91 = scmp.eq.s32.totalorder %s14, 0
      %p92 = por %p90, %p91
      %p93 = scmp.ne.s32.totalorder %s85, %s87
      %p94 = scmp.eq.s32.totalorder %s19, 1
      %p95 = por %p93, %p94
      %p96 = scmp.ne.s32.totalorder %s87, %s88
      %p97 = scmp.eq.s32.totalorder %s19, 0
      %p98 = por %p96, %p97
      %p99 = scmp.ne.s32.totalorder %s87, %s88
      %p100 = scmp.eq.s32.totalorder %s20, 1
      %p101 = por %p99, %p100
      %p103 = scmp.ne.s32.totalorder %s88, %s102
      %p104 = scmp.eq.s32.totalorder %s20, 0
      %p105 = por %p103, %p104
      %s106 = ssub.s32 %s21, %s33
      %p107 = scmp.eq.s32.totalorder %s106, 0
      %s109 = sadd.s32 %s108, 1
      %s110 = scalar_select %p107, %s108, %s109
      %p113 = pneg %p107
      %p114 = scmp.eq.s32.totalorder %s14, 1
      %p115 = por %p113, %p114
      %p116 = scmp.ne.s32.totalorder %s108, %s111
      %p117 = scmp.eq.s32.totalorder %s14, 0
      %p118 = por %p116, %p117
      %p119 = scmp.ne.s32.totalorder %s108, %s111
      %p120 = scmp.eq.s32.totalorder %s19, 1
      %p121 = por %p119, %p120
      %p122 = scmp.ne.s32.totalorder %s111, %s112
      %p123 = scmp.eq.s32.totalorder %s19, 0
      %p124 = por %p122, %p123
      %p125 = scmp.ne.s32.totalorder %s111, %s112
      %p126 = scmp.eq.s32.totalorder %s20, 1
      %p127 = por %p125, %p126
      %p129 = scmp.ne.s32.totalorder %s112, %s128
      %p130 = scmp.eq.s32.totalorder %s20, 0
      %p131 = por %p129, %p130
      %s132 = ssub.s32 %s21, %s33
      %p133 = scmp.eq.s32.totalorder %s132, 0
      %s135 = sadd.s32 %s134, 1
      %s136 = scalar_select %p133, %s134, %s135
      %p139 = pneg %p133
      %p140 = scmp.eq.s32.totalorder %s14, 1
      %p141 = por %p139, %p140
      %p142 = scmp.ne.s32.totalorder %s134, %s137
      %p143 = scmp.eq.s32.totalorder %s14, 0
      %p144 = por %p142, %p143
      %p145 = scmp.ne.s32.totalorder %s134, %s137
      %p146 = scmp.eq.s32.totalorder %s19, 1
      %p147 = por %p145, %p146
      %p148 = scmp.ne.s32.totalorder %s137, %s138
      %p149 = scmp.eq.s32.totalorder %s19, 0
      %p150 = por %p148, %p149
      %p151 = scmp.ne.s32.totalorder %s137, %s138
      %p152 = scmp.eq.s32.totalorder %s20, 1
      %p153 = por %p151, %p152
      %p155 = scmp.ne.s32.totalorder %s138, %s154
      %p156 = scmp.eq.s32.totalorder %s20, 0
      %p157 = por %p155, %p156
      %p158 = scmp.le.s32.totalorder 1, %s14
      %p159 = scmp.lt.s32.totalorder %s14, 3
      %p160 = pnand %p158, %p159
      %p161 = pneg %p160
      // Predicated region
      $region9: #{tpu_custom_call.1} parent=5 // pred_check
        _
      $region10: #{tpu_custom_call.1} parent=5 // pred_check_branch
        %163 = sbr.rel (%p160) target = $region12
      $region11: #{tpu_custom_call.1} parent=5 // pred_region
        %s164 = ssub.s32 %s14, 1
        // Predicated region
        $region13: #{tpu_custom_call.1} parent=11 // pred_check
          %p165 = pneg %p47
        $region14: #{tpu_custom_call.1} parent=11 // pred_check_branch
          %167 = sbr.rel (%p165) target = $region16
        $region15: #{tpu_custom_call.1} parent=11 // pred_region
          _
        $region16: #{tpu_custom_call.1} parent=11 // pred_fallthru
          _
        // Predicated region
        $region17: #{tpu_custom_call.1} parent=11 // pred_check
          %p168 = pneg %p98
        $region18: #{tpu_custom_call.1} parent=11 // pred_check_branch
          %170 = sbr.rel (%p168) target = $region20
        $region19: #{tpu_custom_call.1} parent=11 // pred_region
          _
        $region20: #{tpu_custom_call.1} parent=11 // pred_fallthru
          _
      $region12: #{tpu_custom_call.1} parent=5 // pred_fallthru
        _
      %p171 = scmp.lt.s32.totalorder %s14, 2
      // Predicated region
      $region21: #{tpu_custom_call.1} parent=5 // pred_check
        %p172 = pneg %p171
      $region22: #{tpu_custom_call.1} parent=5 // pred_check_branch
        %174 = sbr.rel (%p172) target = $region24
      $region23: #{tpu_custom_call.1} parent=5 // pred_region
        // Predicated region
        $region25: #{tpu_custom_call.1} parent=23 // pred_check
          %p175 = pneg %p71
        $region26: #{tpu_custom_call.1} parent=23 // pred_check_branch
          %177 = sbr.rel (%p175) target = $region28
        $region27: #{tpu_custom_call.1} parent=23 // pred_region
          %s178 = sand.u32 %s61, 1
          %s179 = scalar_lea.sflag [#allocation3], %s178
          %s180 = sand.u32 %s61, 1
          %s181 = smul.addr %s180, 128
          %s182 = scalar_lea.vmem [#allocation2], %s181
          %s183 = smul.u32 %s21, 2
          %s184 = sadd.s32 %s183, %s22
          %s185 = smul.u32 32, %s184
          %187 = vsyncadd %s179, 0
          %s188 = smul.addr %s185, 4
          %s189 = scalar_lea.hbm %s1, %s188
          %s190 = sshll.u32 %s189, 4
          %s191 = int_to_ptr.hbm [resolvable:$true] %s190
          %s192 = sshll.u32 %s182, 4
          %s193 = int_to_ptr.vmem [resolvable:$true] %s192
          %198 = dma.hbm_to_vmem [thread:$0]  %s191, 2048, %s193, %s179, 64, 64, 4
        $region28: #{tpu_custom_call.1} parent=23 // pred_fallthru
          _
      $region24: #{tpu_custom_call.1} parent=5 // pred_fallthru
        _
      %p199 = scmp.le.s32.totalorder 1, %s14
      %p200 = scmp.lt.s32.totalorder %s14, 3
      %p201 = pnand %p199, %p200
      %p202 = pneg %p201
      // Predicated region
      $region29: #{tpu_custom_call.1} parent=5 // pred_check
        _
      $region30: #{tpu_custom_call.1} parent=5 // pred_check_branch
        %204 = sbr.rel (%p201) target = $region32
      $region31: #{tpu_custom_call.1} parent=5 // pred_region
        %s205 = ssub.s32 %s14, 1
        %s206 = sand.u32 %s64, 1
        %s207 = scalar_lea.sflag [#allocation3], %s206
        %s208 = sand.u32 %s64, 1
        %s209 = smul.addr %s208, 128
        %s210 = scalar_lea.vmem [#allocation2], %s209
        // Predicated region
        $region33: #{tpu_custom_call.1} parent=31 // pred_check
          %p211 = pneg %p77
        $region34: #{tpu_custom_call.1} parent=31 // pred_check_branch
          %213 = sbr.rel (%p211) target = $region36
        $region35: #{tpu_custom_call.1} parent=31 // pred_region
          %215 = dma.done %s207, 2048
        $region36: #{tpu_custom_call.1} parent=31 // pred_fallthru
          _
        %p216 = pneg %p47
        %p217 = pneg %p44
        %s218 = sand.u32 %s64, 1
        %s219 = scalar_lea.sflag [#allocation3], %s218
        %s220 = sand.u32 %s64, 1
        %s221 = smul.addr %s220, 128
        %s222 = scalar_lea.vmem [#allocation2], %s221
        %p223 = pneg %p77
        %p224 = pneg %p74
        %p225 = pneg %p98
        %p226 = pneg %p95
        %p227 = pneg %p124
        %p228 = pneg %p121
        %p229 = scmp.lt.s32.totalorder %s23, 0
        %s230 = scalar_select %p229, %s23, 0
        %s231 = smul.addr %s230, 8
        %s232 = scalar_lea.vmem %s3, %s231
        %p233 = pneg %p150
        %p234 = pneg %p147
        %p235 = scmp.lt.s32.totalorder %s23, 0
        %s236 = scalar_select %p235, %s23, 0
        %s237 = smul.addr %s236, 8
        %s238 = scalar_lea.vmem %s4, %s237
        %s239 = smul.u32 %s23, 2
        %s240 = sadd.s32 %s239, %s24
        %s241 = smul.u32 32, %s240
        %p242 = scmp.lt.s32.totalorder %s23, 0
        %s243 = scalar_select %p242, %s23, 0
        %s244 = smul.addr %s243, 8
        %s245 = scalar_lea.vmem %s3, %s244
        %p246 = scmp.lt.s32.totalorder %s23, 0
        %s247 = scalar_select %p246, %s23, 0
        %s248 = smul.addr %s247, 8
        %s249 = scalar_lea.vmem %s4, %s248
        %p250 = scmp.eq.s32.totalorder %s24, 0
        // Predicated region
        $region37: #{tpu_custom_call.1} parent=31 // pred_check
          %p251 = pneg %p250
        $region38: #{tpu_custom_call.1} parent=31 // pred_check_branch
          %253 = sbr.rel (%p251) target = $region40
        $region39: #{tpu_custom_call.1} parent=31 // pred_region
          %vm254 = vcmask 7168
          %255 = vst.msk [vmem:[%s245] sm:$0xff] %vm254, 0.0
          %256 = vst.msk [vmem:[%s249] sm:$0xff] %vm254, 0.0
        $region40: #{tpu_custom_call.1} parent=31 // pred_fallthru
          _
        %v257 = vld [vmem:[%s0] sm:$0xf]
        %v258 = vld [vmem:[%s210] sm:$0xf]
        %v259 = vld [vmem:[%s210 + $0x4] sm:$0xf]
        %v260 = vld [vmem:[%s210 + $0x8] sm:$0xf]
        %v261 = vld [vmem:[%s210 + $0xc] sm:$0xf]
        %v262 = vld [vmem:[%s210 + $0x10] sm:$0xf]
        %v263 = vld [vmem:[%s210 + $0x14] sm:$0xf]
        %v264 = vld [vmem:[%s210 + $0x18] sm:$0xf]
        %v265 = vld [vmem:[%s210 + $0x1c] sm:$0xf]
        %v266 = vld [vmem:[%s210 + $0x20] sm:$0xf]
        %v267 = vld [vmem:[%s210 + $0x24] sm:$0xf]
        %v268 = vld [vmem:[%s210 + $0x28] sm:$0xf]
        %v269 = vld [vmem:[%s210 + $0x2c] sm:$0xf]
        %v270 = vld [vmem:[%s210 + $0x30] sm:$0xf]
        %v271 = vld [vmem:[%s210 + $0x34] sm:$0xf]
        %v272 = vld [vmem:[%s210 + $0x38] sm:$0xf]
        %v273 = vld [vmem:[%s210 + $0x3c] sm:$0xf]
        %v274 = vld [vmem:[%s210 + $0x40] sm:$0xf]
        %v275 = vld [vmem:[%s210 + $0x44] sm:$0xf]
        %v276 = vld [vmem:[%s210 + $0x48] sm:$0xf]
        %v277 = vld [vmem:[%s210 + $0x4c] sm:$0xf]
        %v278 = vld [vmem:[%s210 + $0x50] sm:$0xf]
        %v279 = vld [vmem:[%s210 + $0x54] sm:$0xf]
        %v280 = vld [vmem:[%s210 + $0x58] sm:$0xf]
        %v281 = vld [vmem:[%s210 + $0x5c] sm:$0xf]
        %v282 = vld [vmem:[%s210 + $0x60] sm:$0xf]
        %v283 = vld [vmem:[%s210 + $0x64] sm:$0xf]
        %v284 = vld [vmem:[%s210 + $0x68] sm:$0xf]
        %v285 = vld [vmem:[%s210 + $0x6c] sm:$0xf]
        %v286 = vld [vmem:[%s210 + $0x70] sm:$0xf]
        %v287 = vld [vmem:[%s210 + $0x74] sm:$0xf]
        %v288 = vld [vmem:[%s210 + $0x78] sm:$0xf]
        %v289 = vld [vmem:[%s210 + $0x7c] sm:$0xf]
        %v322 = vunpack.c.l.b16 %v258
        %v323 = vunpack.c.l.b16 %v259
        %v324 = vunpack.c.l.b16 %v260
        %v325 = vunpack.c.l.b16 %v261
        %v326 = vunpack.c.l.b16 %v262
        %v327 = vunpack.c.l.b16 %v263
        %v328 = vunpack.c.l.b16 %v264
        %v329 = vunpack.c.l.b16 %v265
        %v330 = vunpack.c.l.b16 %v266
        %v331 = vunpack.c.l.b16 %v267
        %v332 = vunpack.c.l.b16 %v268
        %v333 = vunpack.c.l.b16 %v269
        %v334 = vunpack.c.l.b16 %v270
        %v335 = vunpack.c.l.b16 %v271
        %v336 = vunpack.c.l.b16 %v272
        %v337 = vunpack.c.l.b16 %v273
        %v338 = vunpack.c.l.b16 %v274
        %v339 = vunpack.c.l.b16 %v275
        %v340 = vunpack.c.l.b16 %v276
        %v341 = vunpack.c.l.b16 %v277
        %v342 = vunpack.c.l.b16 %v278
        %v343 = vunpack.c.l.b16 %v279
        %v344 = vunpack.c.l.b16 %v280
        %v345 = vunpack.c.l.b16 %v281
        %v346 = vunpack.c.l.b16 %v282
        %v347 = vunpack.c.l.b16 %v283
        %v348 = vunpack.c.l.b16 %v284
        %v349 = vunpack.c.l.b16 %v285
        %v350 = vunpack.c.l.b16 %v286
        %v351 = vunpack.c.l.b16 %v287
        %v352 = vunpack.c.l.b16 %v288
        %v353 = vunpack.c.l.b16 %v289
        %v354 = vpack.c.b16 %v323, %v322
        %v355 = vpack.c.b16 %v325, %v324
        %v356 = vpack.c.b16 %v327, %v326
        %v357 = vpack.c.b16 %v329, %v328
        %v358 = vpack.c.b16 %v331, %v330
        %v359 = vpack.c.b16 %v333, %v332
        %v360 = vpack.c.b16 %v335, %v334
        %v361 = vpack.c.b16 %v337, %v336
        %v362 = vpack.c.b16 %v339, %v338
        %v363 = vpack.c.b16 %v341, %v340
        %v364 = vpack.c.b16 %v343, %v342
        %v365 = vpack.c.b16 %v345, %v344
        %v366 = vpack.c.b16 %v347, %v346
        %v367 = vpack.c.b16 %v349, %v348
        %v368 = vpack.c.b16 %v351, %v350
        %v369 = vpack.c.b16 %v353, %v352
        %386 = vmatpush.bf16.xpose.msra.mxu0 %v361
        %387 = vmatpush.bf16.xpose.msra.mxu0 %v360
        %388 = vmatpush.bf16.xpose.msra.mxu0 %v359
        %389 = vmatpush.bf16.xpose.msra.mxu0 %v358
        %390 = vmatpush.bf16.xpose.msra.mxu0 %v357
        %391 = vmatpush.bf16.xpose.msra.mxu0 %v356
        %392 = vmatpush.bf16.xpose.msra.mxu0 %v355
        %393 = vmatpush.bf16.xpose.msra.mxu0 %v354
        %394 = vmatmul.bf16.gmra.mxu0 %v257
        %v395 = vpop.f32.mrf.mxu0
        %v396 = vadd.f32 0.0, %v395
        %v397 = vpop.f32.mrf.mxu0
        %398 = vdwg.mxu0
        %399 = vmatpush.bf16.xpose.msra.mxu0 %v369
        %400 = vmatpush.bf16.xpose.msra.mxu0 %v368
        %401 = vmatpush.bf16.xpose.msra.mxu0 %v367
        %402 = vmatpush.bf16.xpose.msra.mxu0 %v366
        %403 = vmatpush.bf16.xpose.msra.mxu0 %v365
        %404 = vmatpush.bf16.xpose.msra.mxu0 %v364
        %405 = vmatpush.bf16.xpose.msra.mxu0 %v363
        %406 = vmatpush.bf16.xpose.msra.mxu0 %v362
        %407 = vmatmul.bf16.gmra.mxu0 %v257
        %v408 = vpop.f32.mrf.mxu0
        %v409 = vadd.f32 0.0, %v408
        %v410 = vpop.f32.mrf.mxu0
        %411 = vdwg.mxu0
        %v412 = vmax.f32 %v396, -1.0
        %v413 = vmax.f32 %v409, -1.0
        %v414 = vmin.f32 %v412, 1.0
        %v415 = vmin.f32 %v413, 1.0
        %s416 = smul.u32 %s23, 2
        %s417 = sadd.s32 %s416, %s24
        %s418 = smul.u32 %s417, 256
        %v419 = vld [vmem:[%s2] sm:$0xff]
        %v420 = vstv %s418
        %v421 = vsub.s32 %v419, %v420
        %v422 = vlaneseq
        %v423 = vand.u32 %v422, 127
        %v424 = vadd.s32 %v423, 128
        %425 = vset.pattern.permute.xlu0 0
        %426 = vperm.xlu0 %425, %v421
        %v427 = vpop.permute.xlu0 %426
        %vm428 = vcmp.eq.s32.totalorder %v423, %v427
        %vm429 = vcmp.eq.s32.totalorder %v424, %v427
        %v430 = vsel %vm428, 1, 0
        %v431 = vsel %vm429, 1, 0
        %v432 = vcvt.s32.f32 %v430
        %v433 = vcvt.s32.f32 %v431
        %v434 = vmul.f32 %v432, %v414
        %v435 = vmul.f32 %v433, %v415
        %v436 = vadd.f32 %v434, %v435
        %437 = vadd.xlane.f32.xlu0 %v436
        %v438 = vpop.xlane.xlu0 %437
        %v439 = vadd.f32 %v432, %v433
        %440 = vadd.xlane.f32.xlu0 %v439
        %v441 = vpop.xlane.xlu0 %440
        %v442 = vmul.f32 %v438, %v438
        %v443 = vsub.f32 1.0, %v442
        %v444 = vmax.f32 %v443, 0.0
        %v445 = vrsqrt.pop %v444
        %v446 = vmul.f32 %v445, %v444
        %v447 = vmul.f32 %v446, %v445
        %v448 = vmul.f32 0.5, %v447
        %v449 = vsub.f32 1.5, %v448
        %v450 = vmul.f32 %v445, %v449
        %v451 = vmul.f32 %v444, %v450
        %vm452 = vcmp.eq.f32.partialorder %v444, inf
        %v453 = vsel %vm452, %v444, %v451
        %vm454 = vcmp.eq.f32.partialorder %v444, 0.0
        %v455 = vand.u32 %v444, 2147483648
        %v456 = vsel %vm454, %v455, %v453
        %v457 = vmul.f32 %v438, 0.87758255
        %v458 = vmul.f32 %v456, 0.47942555
        %v459 = vsub.f32 %v457, %v458
        %vm460 = vcmp.gt.f32.partialorder %v438, -0.87758255
        %v461 = vsub.f32 %v438, 0.23971277
        %v462 = vsel %vm460, %v459, %v461
        %v463 = vsub.f32 %v462, %v438
        %v464 = vmul.f32 %v432, %v463
        %v465 = vmul.f32 %v433, %v463
        %v466 = vadd.f32 %v414, %v464
        %v467 = vadd.f32 %v415, %v465
        %v468 = vsub.f32 %v466, 1.0
        %v469 = vsub.f32 %v467, 1.0
        %v470 = vmul.f32 %v468, 30.0
        %v471 = vmul.f32 %v469, 30.0
        %s472 = ssub.s32 384, %s418
        %v473 = vstv %s472
        %vm474 = vcmp.lt.s32.totalorder %v423, %v473
        %vm475 = vcmp.lt.s32.totalorder %v424, %v473
        %v476 = vsel %vm474, 1, 0
        %v477 = vsel %vm475, 1, 0
        %vm478 = vcmp.eq.s32.totalorder %v476, 1
        %vm479 = vcmp.eq.s32.totalorder %v477, 1
        %v480 = vsel %vm478, %v470, -inf
        %v481 = vsel %vm479, %v471, -inf
        %v482 = vld [vmem:[%s245] sm:$0xff]
        %v483 = vmul.f32 %v480, 1.442695
        %v484 = vpow.pop %v483
        %v485 = vmul.f32 %v481, 1.442695
        %v486 = vpow.pop %v485
        %v487 = vadd.f32 %v484, %v486
        %488 = vadd.xlane.f32.xlu0 %v487
        %v489 = vpop.xlane.xlu0 %488
        %v490 = vadd.f32 %v482, %v489
        %vm491 = vcmask 7168
        %492 = vst.msk [vmem:[%s245] sm:$0xff] %vm491, %v490
        %v493 = vld [vmem:[%s249] sm:$0xff]
        %v494 = vmul.f32 %v462, 30.0
        %v495 = vmul.f32 %v441, %v494
        %v496 = vadd.f32 %v493, %v495
        %497 = vst.msk [vmem:[%s249] sm:$0xff] %vm491, %v496
        %p498 = scmp.lt.s32.totalorder %s23, 0
        %s499 = scalar_select %p498, %s23, 0
        %s500 = smul.addr %s499, 8
        %s501 = scalar_lea.vmem %s3, %s500
        %p502 = scmp.lt.s32.totalorder %s23, 0
        %s503 = scalar_select %p502, %s23, 0
        %s504 = smul.addr %s503, 8
        %s505 = scalar_lea.vmem %s4, %s504
        // Predicated region
        $region41: #{tpu_custom_call.1} parent=31 // pred_check
          %p506 = pneg %p121
        $region42: #{tpu_custom_call.1} parent=31 // pred_check_branch
          %508 = sbr.rel (%p506) target = $region44
        $region43: #{tpu_custom_call.1} parent=31 // pred_region
          _
        $region44: #{tpu_custom_call.1} parent=31 // pred_fallthru
          _
        // Predicated region
        $region45: #{tpu_custom_call.1} parent=31 // pred_check
          %p509 = pneg %p147
        $region46: #{tpu_custom_call.1} parent=31 // pred_check_branch
          %511 = sbr.rel (%p509) target = $region48
        $region47: #{tpu_custom_call.1} parent=31 // pred_region
          _
        $region48: #{tpu_custom_call.1} parent=31 // pred_fallthru
          _
        // Predicated region
        $region49: #{tpu_custom_call.1} parent=31 // pred_check
          %p512 = pneg %p121
        $region50: #{tpu_custom_call.1} parent=31 // pred_check_branch
          %514 = sbr.rel (%p512) target = $region52
        $region51: #{tpu_custom_call.1} parent=31 // pred_region
          %p515 = scmp.lt.s32.totalorder %s23, 0
          %s516 = scalar_select %p515, %s23, 0
          %s517 = smul.addr %s516, 8
          %s518 = scalar_lea.vmem %s3, %s517
        $region52: #{tpu_custom_call.1} parent=31 // pred_fallthru
          _
        // Predicated region
        $region53: #{tpu_custom_call.1} parent=31 // pred_check
          %p519 = pneg %p147
        $region54: #{tpu_custom_call.1} parent=31 // pred_check_branch
          %521 = sbr.rel (%p519) target = $region56
        $region55: #{tpu_custom_call.1} parent=31 // pred_region
          %p522 = scmp.lt.s32.totalorder %s23, 0
          %s523 = scalar_select %p522, %s23, 0
          %s524 = smul.addr %s523, 8
          %s525 = scalar_lea.vmem %s4, %s524
        $region56: #{tpu_custom_call.1} parent=31 // pred_fallthru
          _
      $region32: #{tpu_custom_call.1} parent=5 // pred_fallthru
        _
      %p526 = scmp.le.s32.totalorder 2, %s14
      // Predicated region
      $region57: #{tpu_custom_call.1} parent=5 // pred_check
        %p527 = pneg %p526
      $region58: #{tpu_custom_call.1} parent=5 // pred_check_branch
        %529 = sbr.rel (%p527) target = $region60
      $region59: #{tpu_custom_call.1} parent=5 // pred_region
        %s530 = ssub.s32 %s14, 2
      $region60: #{tpu_custom_call.1} parent=5 // pred_fallthru
        _
    $region6: #{tpu_custom_call.1} parent=1 // loop_footer
      %s18 = sadd.s32 1, %s14
    $region7: #{tpu_custom_call.1} parent=1 // loop_footer_branch
      %13 = sbr.rel target = $region3
    $region8: #{tpu_custom_call.1} parent=1 // loop_exit
      _
    %531 = vsyncpa [#allocation3], 1
    %s532 = scalar_lea.sflag [#allocation3], 1
    %533 = vsyncpa %s532, 1

</llo_original>
